<compile_context>
chip_gen: v5e
topology: v5e:2x2
jax: 0.10.0
libtpu: 0.0.40
codegen_flags: <defaults>
</compile_context>

<pallas_src>
import jax
import jax.numpy as jnp
from jax.experimental import pallas as pl
from jax.experimental.pallas import tpu as pltpu

_LANE = 128


def _round_up(n, m):
    return ((n + m - 1) // m) * m


def _largest_divisor_leq(n, cap):
    cap = max(1, min(n, cap))
    for t in range(cap, 0, -1):
        if n % t == 0:
            return t
    return 1


def mlp_kernel(x_ref,
               w1_ref, b1_ref,
               w2_ref, b2_ref,
               w3_ref, b3_ref,
               w4_ref, b4_ref,
               w5_ref, b5_ref,
               o_ref):
    # Transposed layout: features on sublanes, batch on lanes.
    xT = x_ref[...]                                   # (3, TB) f32

    # Layer 1: (64, 3) @ (3, TB) -- K=3, a single cheap f32 MXU pass.
    h = jnp.dot(w1_ref[...], xT,
                preferred_element_type=jnp.float32) + b1_ref[...]
    h = jnp.maximum(h, 0.0)

    # Layers 2-4: bf16 operands on the MXU, f32 accumulation, f32 bias/ReLU.
    h = jnp.dot(w2_ref[...], h.astype(jnp.bfloat16),
                preferred_element_type=jnp.float32) + b2_ref[...]
    h = jnp.maximum(h, 0.0)

    h = jnp.dot(w3_ref[...], h.astype(jnp.bfloat16),
                preferred_element_type=jnp.float32) + b3_ref[...]
    h = jnp.maximum(h, 0.0)

    h = jnp.dot(w4_ref[...], h.astype(jnp.bfloat16),
                preferred_element_type=jnp.float32) + b4_ref[...]
    h = jnp.maximum(h, 0.0)

    # Layer 5 (no activation): M=3, kept f32 for final precision.
    h = jnp.dot(w5_ref[...], h,
                preferred_element_type=jnp.float32) + b5_ref[...]

    o_ref[...] = h.astype(o_ref.dtype)


def prepare_params(params):
    """Transpose / cast weights once (hoisted out of the per-call path).

    params: list of (W (in, out) f32, b (out,) f32), PyTorch Linear layout.
    Returns the flat tuple of kernel operands in transposed layout:
      W_T (out, in)  -- bf16 for the 256-wide MXU layers, f32 for layers 1 & 5
      b   (out, 1)   -- f32 column vectors (lane-broadcast inside the kernel)
    """
    (w1, b1), (w2, b2), (w3, b3), (w4, b4), (w5, b5) = params

    def T(w):
        return jnp.asarray(w, jnp.float32).T

    def col(b):
        return jnp.asarray(b, jnp.float32).reshape(-1, 1)

    return (
        T(w1), col(b1),
        T(w2).astype(jnp.bfloat16), col(b2),
        T(w3).astype(jnp.bfloat16), col(b3),
        T(w4).astype(jnp.bfloat16), col(b4),
        T(w5), col(b5),
    )


def mlp_forward(x, prepared, *, tb=2048):
    """x: (B, 3) float32. prepared: output of prepare_params()."""
    B = x.shape[0]

    # Batch maps to lanes -> pad to a multiple of 128 only, then pick TB from
    # divisors of the padded size (no extra padding waste). Keep >= 2 grid
    # steps when possible so both v7x TensorCores get work.
    B128 = _round_up(max(B, 1), _LANE)
    nblk = B128 // _LANE
    t_cap = max(1, tb // _LANE)
    if nblk >= 2:
        t_cap = min(t_cap, max(1, nblk // 2))
    TB = _LANE * _largest_divisor_leq(nblk, t_cap)
    grid = (B128 // TB,)

    xT = jnp.asarray(x, jnp.float32).T                # (3, B)
    if B128 != B:
        xT = jnp.pad(xT, ((0, 0), (0, B128 - B)))

    def resident(a):
        # Full-array block, same block index every grid step -> stays in VMEM.
        return pl.BlockSpec(a.shape, lambda i: (0, 0))

    flops_per_row = 2 * (3 * 64 + 64 * 256 + 256 * 256 + 256 * 64 + 64 * 3)
    weight_bytes = sum(int(a.size) * a.dtype.itemsize for a in prepared)
    cost = pl.CostEstimate(
        flops=flops_per_row * B128,
        transcendentals=0,
        bytes_accessed=B128 * (3 + 3) * 4 + weight_bytes,
    )

    out_t = pl.pallas_call(
        mlp_kernel,
        out_shape=jax.ShapeDtypeStruct((3, B128), jnp.float32),
        grid=grid,
        in_specs=[pl.BlockSpec((3, TB), lambda i: (0, i))]   # x, lane-dense
                 + [resident(a) for a in prepared],
        out_specs=pl.BlockSpec((3, TB), lambda i: (0, i)),
        compiler_params=pltpu.CompilerParams(
            dimension_semantics=("parallel",),
            vmem_limit_bytes=32 * 1024 * 1024,
        ),
        cost_estimate=cost,
    )(xT, *prepared)

    return out_t[:, :B].T                              # (B, 3)


def init_params(key):
    """Deterministic init mimicking PyTorch's default Linear init
    (uniform in +-1/sqrt(fan_in))."""
    dims = [(3, 64), (64, 256), (256, 256), (256, 64), (64, 3)]
    params = []
    for fan_in, fan_out in dims:
        kw, kb, key = jax.random.split(key, 3)
        bound = 1.0 / jnp.sqrt(float(fan_in))
        w = jax.random.uniform(kw, (fan_in, fan_out), jnp.float32, -bound, bound)
        b = jax.random.uniform(kb, (fan_out,), jnp.float32, -bound, bound)
        params.append((w, b))
    return params


def reference_forward(x, params):
    h = x
    for i, (w, b) in enumerate(params):
        h = h @ w + b
        if i < len(params) - 1:
            h = jnp.maximum(h, 0.0)
    return h


if __name__ == "__main__":
    key = jax.random.PRNGKey(0)
    kx, kp = jax.random.split(key)

    B = 8
    x = jax.random.normal(kx, (B, 3), jnp.float32)
    params = init_params(kp)
    prepared = prepare_params(params)   # one-time weight transpose / bf16 cast

    out = mlp_forward(x, prepared)
    out = jax.block_until_ready(out)

    ref = reference_forward(x, params)
    assert out.shape == (B, 3)
    # Relaxed tolerance: layers 2-4 run with bf16 operands (f32 accumulation).
    assert jnp.allclose(out, ref, atol=3e-2, rtol=3e-2), (
        f"max abs diff {jnp.max(jnp.abs(out - ref))}")

    print("KERNEL_OK")
</pallas_src>

<mosaic_0001>
module attributes {stable_mosaic.version = 11 : i64} {
  func.func @mlp_kernel(%arg0: i32, %arg1: memref<3x128xf32, #tpu.memory_space<vmem>>, %arg2: memref<64x3xf32, #tpu.memory_space<vmem>>, %arg3: memref<64x1xf32, #tpu.memory_space<vmem>>, %arg4: memref<256x64xbf16, #tpu.memory_space<vmem>>, %arg5: memref<256x1xf32, #tpu.memory_space<vmem>>, %arg6: memref<256x256xbf16, #tpu.memory_space<vmem>>, %arg7: memref<256x1xf32, #tpu.memory_space<vmem>>, %arg8: memref<64x256xbf16, #tpu.memory_space<vmem>>, %arg9: memref<64x1xf32, #tpu.memory_space<vmem>>, %arg10: memref<3x64xf32, #tpu.memory_space<vmem>>, %arg11: memref<3x1xf32, #tpu.memory_space<vmem>>, %arg12: memref<3x128xf32, #tpu.memory_space<vmem>>) attributes {dimension_semantics = [#tpu.dimension_semantics<parallel>], iteration_bounds = array<i64: 1>, scalar_prefetch = 0 : i64, scratch_operands = 0 : i64, tpu.core_type = #tpu.core_type<tc>, window_params = [{transform_indices = @transform_0, window_bounds = array<i64: 3, 128>}, {pipeline_mode = #tpu.pipeline_mode<synchronous>, transform_indices = @transform_1, window_bounds = array<i64: 64, 3>}, {pipeline_mode = #tpu.pipeline_mode<synchronous>, transform_indices = @transform_2, window_bounds = array<i64: 64, 1>}, {pipeline_mode = #tpu.pipeline_mode<synchronous>, transform_indices = @transform_3, window_bounds = array<i64: 256, 64>}, {pipeline_mode = #tpu.pipeline_mode<synchronous>, transform_indices = @transform_4, window_bounds = array<i64: 256, 1>}, {pipeline_mode = #tpu.pipeline_mode<synchronous>, transform_indices = @transform_5, window_bounds = array<i64: 256, 256>}, {pipeline_mode = #tpu.pipeline_mode<synchronous>, transform_indices = @transform_6, window_bounds = array<i64: 256, 1>}, {pipeline_mode = #tpu.pipeline_mode<synchronous>, transform_indices = @transform_7, window_bounds = array<i64: 64, 256>}, {pipeline_mode = #tpu.pipeline_mode<synchronous>, transform_indices = @transform_8, window_bounds = array<i64: 64, 1>}, {pipeline_mode = #tpu.pipeline_mode<synchronous>, transform_indices = @transform_9, window_bounds = array<i64: 3, 64>}, {pipeline_mode = #tpu.pipeline_mode<synchronous>, transform_indices = @transform_10, window_bounds = array<i64: 3, 1>}, {transform_indices = @transform_11, window_bounds = array<i64: 3, 128>}]} {
    %c0 = arith.constant 0 : index
    %c0_0 = arith.constant 0 : index
    %0 = vector.load %arg1[%c0, %c0_0] : memref<3x128xf32, #tpu.memory_space<vmem>>, vector<3x128xf32>
    %c0_1 = arith.constant 0 : index
    %c0_2 = arith.constant 0 : index
    %1 = vector.load %arg2[%c0_1, %c0_2] : memref<64x3xf32, #tpu.memory_space<vmem>>, vector<64x3xf32>
    %cst = arith.constant dense<0.000000e+00> : vector<64x128xf32>
    %2 = tpu.matmul %1, %0, %cst {dimension_numbers = #tpu.dot_dimension_numbers<[1], [0], [0], [1], [0, 0, 1, 1], [], []>} : vector<64x3xf32>, vector<3x128xf32>, vector<64x128xf32> -> vector<64x128xf32>
    %c0_3 = arith.constant 0 : index
    %c0_4 = arith.constant 0 : index
    %3 = vector.load %arg3[%c0_3, %c0_4] : memref<64x1xf32, #tpu.memory_space<vmem>>, vector<64x1xf32>
    %4 = vector.broadcast %3 : vector<64x1xf32> to vector<64x128xf32>
    %5 = arith.addf %2, %4 : vector<64x128xf32>
    %cst_5 = arith.constant 0.000000e+00 : f32
    %6 = vector.broadcast %cst_5 : f32 to vector<64x128xf32>
    %7 = arith.maximumf %5, %6 : vector<64x128xf32>
    %c0_6 = arith.constant 0 : index
    %c0_7 = arith.constant 0 : index
    %8 = vector.load %arg4[%c0_6, %c0_7] : memref<256x64xbf16, #tpu.memory_space<vmem>>, vector<256x64xbf16>
    %9 = arith.truncf %7 : vector<64x128xf32> to vector<64x128xbf16>
    %cst_8 = arith.constant dense<0.000000e+00> : vector<256x128xf32>
    %10 = tpu.matmul %8, %9, %cst_8 {dimension_numbers = #tpu.dot_dimension_numbers<[1], [0], [0], [1], [0, 0, 1, 1], [], []>} : vector<256x64xbf16>, vector<64x128xbf16>, vector<256x128xf32> -> vector<256x128xf32>
    %c0_9 = arith.constant 0 : index
    %c0_10 = arith.constant 0 : index
    %11 = vector.load %arg5[%c0_9, %c0_10] : memref<256x1xf32, #tpu.memory_space<vmem>>, vector<256x1xf32>
    %12 = vector.broadcast %11 : vector<256x1xf32> to vector<256x128xf32>
    %13 = arith.addf %10, %12 : vector<256x128xf32>
    %cst_11 = arith.constant 0.000000e+00 : f32
    %14 = vector.broadcast %cst_11 : f32 to vector<256x128xf32>
    %15 = arith.maximumf %13, %14 : vector<256x128xf32>
    %c0_12 = arith.constant 0 : index
    %c0_13 = arith.constant 0 : index
    %16 = vector.load %arg6[%c0_12, %c0_13] : memref<256x256xbf16, #tpu.memory_space<vmem>>, vector<256x256xbf16>
    %17 = arith.truncf %15 : vector<256x128xf32> to vector<256x128xbf16>
    %cst_14 = arith.constant dense<0.000000e+00> : vector<256x128xf32>
    %18 = tpu.matmul %16, %17, %cst_14 {dimension_numbers = #tpu.dot_dimension_numbers<[1], [0], [0], [1], [0, 0, 1, 1], [], []>} : vector<256x256xbf16>, vector<256x128xbf16>, vector<256x128xf32> -> vector<256x128xf32>
    %c0_15 = arith.constant 0 : index
    %c0_16 = arith.constant 0 : index
    %19 = vector.load %arg7[%c0_15, %c0_16] : memref<256x1xf32, #tpu.memory_space<vmem>>, vector<256x1xf32>
    %20 = vector.broadcast %19 : vector<256x1xf32> to vector<256x128xf32>
    %21 = arith.addf %18, %20 : vector<256x128xf32>
    %cst_17 = arith.constant 0.000000e+00 : f32
    %22 = vector.broadcast %cst_17 : f32 to vector<256x128xf32>
    %23 = arith.maximumf %21, %22 : vector<256x128xf32>
    %c0_18 = arith.constant 0 : index
    %c0_19 = arith.constant 0 : index
    %24 = vector.load %arg8[%c0_18, %c0_19] : memref<64x256xbf16, #tpu.memory_space<vmem>>, vector<64x256xbf16>
    %25 = arith.truncf %23 : vector<256x128xf32> to vector<256x128xbf16>
    %cst_20 = arith.constant dense<0.000000e+00> : vector<64x128xf32>
    %26 = tpu.matmul %24, %25, %cst_20 {dimension_numbers = #tpu.dot_dimension_numbers<[1], [0], [0], [1], [0, 0, 1, 1], [], []>} : vector<64x256xbf16>, vector<256x128xbf16>, vector<64x128xf32> -> vector<64x128xf32>
    %c0_21 = arith.constant 0 : index
    %c0_22 = arith.constant 0 : index
    %27 = vector.load %arg9[%c0_21, %c0_22] : memref<64x1xf32, #tpu.memory_space<vmem>>, vector<64x1xf32>
    %28 = vector.broadcast %27 : vector<64x1xf32> to vector<64x128xf32>
    %29 = arith.addf %26, %28 : vector<64x128xf32>
    %cst_23 = arith.constant 0.000000e+00 : f32
    %30 = vector.broadcast %cst_23 : f32 to vector<64x128xf32>
    %31 = arith.maximumf %29, %30 : vector<64x128xf32>
    %c0_24 = arith.constant 0 : index
    %c0_25 = arith.constant 0 : index
    %32 = vector.load %arg10[%c0_24, %c0_25] : memref<3x64xf32, #tpu.memory_space<vmem>>, vector<3x64xf32>
    %cst_26 = arith.constant dense<0.000000e+00> : vector<3x128xf32>
    %33 = tpu.matmul %32, %31, %cst_26 {dimension_numbers = #tpu.dot_dimension_numbers<[1], [0], [0], [1], [0, 0, 1, 1], [], []>} : vector<3x64xf32>, vector<64x128xf32>, vector<3x128xf32> -> vector<3x128xf32>
    %c0_27 = arith.constant 0 : index
    %c0_28 = arith.constant 0 : index
    %34 = vector.load %arg11[%c0_27, %c0_28] : memref<3x1xf32, #tpu.memory_space<vmem>>, vector<3x1xf32>
    %35 = vector.broadcast %34 : vector<3x1xf32> to vector<3x128xf32>
    %36 = arith.addf %33, %35 : vector<3x128xf32>
    %c0_29 = arith.constant 0 : index
    %c0_30 = arith.constant 0 : index
    %37 = vector.load %arg12[%c0_29, %c0_30] : memref<3x128xf32, #tpu.memory_space<vmem>>, vector<3x128xf32>
    tpu.vector_store %arg12[%c0_29, %c0_30], %36 {strides = array<i32>} : memref<3x128xf32, #tpu.memory_space<vmem>>, vector<3x128xf32>,
    return
  }
  func.func @transform_0(%arg0: i32) -> (i32, i32) {
    %c0_i32 = arith.constant 0 : i32
    %c0_i32_0 = arith.constant 0 : i32
    return %c0_i32, %arg0 : i32, i32
  }
  func.func @transform_1(%arg0: i32) -> (i32, i32) {
    %c0_i32 = arith.constant 0 : i32
    %c0_i32_0 = arith.constant 0 : i32
    %c0_i32_1 = arith.constant 0 : i32
    return %c0_i32, %c0_i32_0 : i32, i32
  }
  func.func @transform_2(%arg0: i32) -> (i32, i32) {
    %c0_i32 = arith.constant 0 : i32
    %c0_i32_0 = arith.constant 0 : i32
    %c0_i32_1 = arith.constant 0 : i32
    return %c0_i32, %c0_i32_0 : i32, i32
  }
  func.func @transform_3(%arg0: i32) -> (i32, i32) {
    %c0_i32 = arith.constant 0 : i32
    %c0_i32_0 = arith.constant 0 : i32
    %c0_i32_1 = arith.constant 0 : i32
    return %c0_i32, %c0_i32_0 : i32, i32
  }
  func.func @transform_4(%arg0: i32) -> (i32, i32) {
    %c0_i32 = arith.constant 0 : i32
    %c0_i32_0 = arith.constant 0 : i32
    %c0_i32_1 = arith.constant 0 : i32
    return %c0_i32, %c0_i32_0 : i32, i32
  }
  func.func @transform_5(%arg0: i32) -> (i32, i32) {
    %c0_i32 = arith.constant 0 : i32
    %c0_i32_0 = arith.constant 0 : i32
    %c0_i32_1 = arith.constant 0 : i32
    return %c0_i32, %c0_i32_0 : i32, i32
  }
  func.func @transform_6(%arg0: i32) -> (i32, i32) {
    %c0_i32 = arith.constant 0 : i32
    %c0_i32_0 = arith.constant 0 : i32
    %c0_i32_1 = arith.constant 0 : i32
    return %c0_i32, %c0_i32_0 : i32, i32
  }
  func.func @transform_7(%arg0: i32) -> (i32, i32) {
    %c0_i32 = arith.constant 0 : i32
    %c0_i32_0 = arith.constant 0 : i32
    %c0_i32_1 = arith.constant 0 : i32
    return %c0_i32, %c0_i32_0 : i32, i32
  }
  func.func @transform_8(%arg0: i32) -> (i32, i32) {
    %c0_i32 = arith.constant 0 : i32
    %c0_i32_0 = arith.constant 0 : i32
    %c0_i32_1 = arith.constant 0 : i32
    return %c0_i32, %c0_i32_0 : i32, i32
  }
  func.func @transform_9(%arg0: i32) -> (i32, i32) {
    %c0_i32 = arith.constant 0 : i32
    %c0_i32_0 = arith.constant 0 : i32
    %c0_i32_1 = arith.constant 0 : i32
    return %c0_i32, %c0_i32_0 : i32, i32
  }
  func.func @transform_10(%arg0: i32) -> (i32, i32) {
    %c0_i32 = arith.constant 0 : i32
    %c0_i32_0 = arith.constant 0 : i32
    %c0_i32_1 = arith.constant 0 : i32
    return %c0_i32, %c0_i32_0 : i32, i32
  }
  func.func @transform_11(%arg0: i32) -> (i32, i32) {
    %c0_i32 = arith.constant 0 : i32
    %c0_i32_0 = arith.constant 0 : i32
    return %c0_i32, %arg0 : i32, i32
  }
}

</mosaic_0001>

<llo_original>
// kernel: tpu_custom_call.1
$region0: #{tpu_custom_call.1}
  #allocation0 [shape = 'u32[]', space=smem, size = 0x4, offset = 0x4, fixed_abs, tag = 'smem constant byte address 0x4 - core index']
  #allocation1 [shape = 'u32[72,128]{1,0:T(1,128)}', space=vmem, size = 0x9000, scoped, tag = 'internal scratch']
  %s0 = inlined_call_operand.vmem [shape: f32[3,128], index: 0, kind: input, shape index: {}]
  %s1 = inlined_call_operand.vmem [shape: f32[64,3], index: 1, kind: input, shape index: {}]
  %s2 = inlined_call_operand.vmem [shape: f32[64,1], index: 2, kind: input, shape index: {}]
  %s3 = inlined_call_operand.vmem [shape: bf16[256,64], index: 3, kind: input, shape index: {}]
  %s4 = inlined_call_operand.vmem [shape: f32[256,1], index: 4, kind: input, shape index: {}]
  %s5 = inlined_call_operand.vmem [shape: bf16[256,256], index: 5, kind: input, shape index: {}]
  %s6 = inlined_call_operand.vmem [shape: f32[256,1], index: 6, kind: input, shape index: {}]
  %s7 = inlined_call_operand.vmem [shape: bf16[64,256], index: 7, kind: input, shape index: {}]
  %s8 = inlined_call_operand.vmem [shape: f32[64,1], index: 8, kind: input, shape index: {}]
  %s9 = inlined_call_operand.vmem [shape: f32[3,64], index: 9, kind: input, shape index: {}]
  %s10 = inlined_call_operand.vmem [shape: f32[3,1], index: 10, kind: input, shape index: {}]
  %s11 = inlined_call_operand.hbm [shape: f32[3,128], index: 11, kind: output, shape index: {}]
  %s12 = sld [smem:[#allocation0]]
  $region54: #{tpu_custom_call.1} parent=0
    _
  %s14 = ssub.s32 1, %s12
  %s15 = scalar_select 0, %s14, %s12
  $region1: #{tpu_custom_call.1} parent=0
    #allocation2 [shape = 'u8[2048]{0}', space=vmem, size = 0x800, scoped, tag = 'output window, operand 0, single buffered']
    #allocation3 [shape = 's32[1]{0}', space=sflag, size = 0x4, scoped, tag = 'scoped memory for tpu_custom_call.1']
    %16 = vsyncpa [#allocation3], 0
    // Predicated region
    $region2: #{tpu_custom_call.1} parent=1 // pred_check
      _
    $region3: #{tpu_custom_call.1} parent=1 // pred_check_branch
      %18 = sbr.rel (0) target = $region5
    $region4: #{tpu_custom_call.1} parent=1 // pred_region
      _
    $region5: #{tpu_custom_call.1} parent=1 // pred_fallthru
      _
    // Predicated region
    $region6: #{tpu_custom_call.1} parent=1 // pred_check
      _
    $region7: #{tpu_custom_call.1} parent=1 // pred_check_branch
      %20 = sbr.rel (0) target = $region9
    $region8: #{tpu_custom_call.1} parent=1 // pred_region
      _
    $region9: #{tpu_custom_call.1} parent=1 // pred_fallthru
      _
    // Predicated region
    $region10: #{tpu_custom_call.1} parent=1 // pred_check
      _
    $region11: #{tpu_custom_call.1} parent=1 // pred_check_branch
      %22 = sbr.rel (0) target = $region13
    $region12: #{tpu_custom_call.1} parent=1 // pred_region
      _
    $region13: #{tpu_custom_call.1} parent=1 // pred_fallthru
      _
    // Predicated region
    $region14: #{tpu_custom_call.1} parent=1 // pred_check
      _
    $region15: #{tpu_custom_call.1} parent=1 // pred_check_branch
      %24 = sbr.rel (0) target = $region17
    $region16: #{tpu_custom_call.1} parent=1 // pred_region
      _
    $region17: #{tpu_custom_call.1} parent=1 // pred_fallthru
      _
    // Predicated region
    $region18: #{tpu_custom_call.1} parent=1 // pred_check
      _
    $region19: #{tpu_custom_call.1} parent=1 // pred_check_branch
      %26 = sbr.rel (0) target = $region21
    $region20: #{tpu_custom_call.1} parent=1 // pred_region
      _
    $region21: #{tpu_custom_call.1} parent=1 // pred_fallthru
      _
    // Predicated region
    $region22: #{tpu_custom_call.1} parent=1 // pred_check
      _
    $region23: #{tpu_custom_call.1} parent=1 // pred_check_branch
      %28 = sbr.rel (0) target = $region25
    $region24: #{tpu_custom_call.1} parent=1 // pred_region
      _
    $region25: #{tpu_custom_call.1} parent=1 // pred_fallthru
      _
    // Predicated region
    $region26: #{tpu_custom_call.1} parent=1 // pred_check
      _
    $region27: #{tpu_custom_call.1} parent=1 // pred_check_branch
      %30 = sbr.rel (0) target = $region29
    $region28: #{tpu_custom_call.1} parent=1 // pred_region
      _
    $region29: #{tpu_custom_call.1} parent=1 // pred_fallthru
      _
    // Predicated region
    $region30: #{tpu_custom_call.1} parent=1 // pred_check
      _
    $region31: #{tpu_custom_call.1} parent=1 // pred_check_branch
      %32 = sbr.rel (0) target = $region33
    $region32: #{tpu_custom_call.1} parent=1 // pred_region
      _
    $region33: #{tpu_custom_call.1} parent=1 // pred_fallthru
      _
    // Predicated region
    $region34: #{tpu_custom_call.1} parent=1 // pred_check
      _
    $region35: #{tpu_custom_call.1} parent=1 // pred_check_branch
      %34 = sbr.rel (0) target = $region37
    $region36: #{tpu_custom_call.1} parent=1 // pred_region
      _
    $region37: #{tpu_custom_call.1} parent=1 // pred_fallthru
      _
    // Predicated region
    $region38: #{tpu_custom_call.1} parent=1 // pred_check
      _
    $region39: #{tpu_custom_call.1} parent=1 // pred_check_branch
      %36 = sbr.rel (0) target = $region41
    $region40: #{tpu_custom_call.1} parent=1 // pred_region
      _
    $region41: #{tpu_custom_call.1} parent=1 // pred_fallthru
      _
    // Predicated region
    $region42: #{tpu_custom_call.1} parent=1 // pred_check
      _
    $region43: #{tpu_custom_call.1} parent=1 // pred_check_branch
      %38 = sbr.rel (0) target = $region45
    $region44: #{tpu_custom_call.1} parent=1 // pred_region
      _
    $region45: #{tpu_custom_call.1} parent=1 // pred_fallthru
      _
    %v40 = vld [vmem:[%s0] sm:$0x7]
    %v41 = vld [vmem:[%s1] sm:$0xff]
    %v42 = vld [vmem:[%s1 + $0x8] sm:$0xff]
    %v43 = vld [vmem:[%s1 + $0x10] sm:$0xff]
    %v44 = vld [vmem:[%s1 + $0x18] sm:$0xff]
    %v45 = vld [vmem:[%s1 + $0x20] sm:$0xff]
    %v46 = vld [vmem:[%s1 + $0x28] sm:$0xff]
    %v47 = vld [vmem:[%s1 + $0x30] sm:$0xff]
    %v48 = vld [vmem:[%s1 + $0x38] sm:$0xff]
    %v49 = vld [vmem:[%s2] sm:$0xff]
    %v50 = vld [vmem:[%s2 + $0x8] sm:$0xff]
    %v51 = vld [vmem:[%s2 + $0x10] sm:$0xff]
    %v52 = vld [vmem:[%s2 + $0x18] sm:$0xff]
    %v53 = vld [vmem:[%s2 + $0x20] sm:$0xff]
    %v54 = vld [vmem:[%s2 + $0x28] sm:$0xff]
    %v55 = vld [vmem:[%s2 + $0x30] sm:$0xff]
    %v56 = vld [vmem:[%s2 + $0x38] sm:$0xff]
    %58 = vset.pattern.permute.xlu0 0
    %59 = vperm.xlu0 %58, %v49
    %v60 = vpop.permute.xlu0 %59
    %63 = vset.pattern.permute.xlu0 0
    %64 = vperm.xlu0 %63, %v50
    %v65 = vpop.permute.xlu0 %64
    %68 = vset.pattern.permute.xlu0 0
    %69 = vperm.xlu0 %68, %v51
    %v70 = vpop.permute.xlu0 %69
    %73 = vset.pattern.permute.xlu0 0
    %74 = vperm.xlu0 %73, %v52
    %v75 = vpop.permute.xlu0 %74
    %78 = vset.pattern.permute.xlu0 0
    %79 = vperm.xlu0 %78, %v53
    %v80 = vpop.permute.xlu0 %79
    %83 = vset.pattern.permute.xlu0 0
    %84 = vperm.xlu0 %83, %v54
    %v85 = vpop.permute.xlu0 %84
    %88 = vset.pattern.permute.xlu0 0
    %89 = vperm.xlu0 %88, %v55
    %v90 = vpop.permute.xlu0 %89
    %93 = vset.pattern.permute.xlu0 0
    %94 = vperm.xlu0 %93, %v56
    %v95 = vpop.permute.xlu0 %94
    %vm97 = vcmask 23552
    %v99 = vsel %vm97, %v41, 0
    %v102 = vsel %vm97, %v42, 0
    %v105 = vsel %vm97, %v43, 0
    %v108 = vsel %vm97, %v44, 0
    %v111 = vsel %vm97, %v45, 0
    %v114 = vsel %vm97, %v46, 0
    %v117 = vsel %vm97, %v47, 0
    %v120 = vsel %vm97, %v48, 0
    %vm122 = vcmask 1042432
    %v124 = vsel %vm122, %v40, 0
    %126 = vmatpush.msra.mxu0 0.0
    %127 = vmatpush.msra.mxu0 0.0
    %128 = vmatpush.msra.mxu0 0.0
    %129 = vmatpush.msra.mxu0 0.0
    %130 = vmatpush.msra.mxu0 0.0
    %131 = vmatpush.msra.mxu0 0.0
    %132 = vmatpush.msra.mxu0 0.0
    %133 = vmatpush.msra.mxu0 0.0
    %134 = vmatpush.msra.mxu0 0.0
    %135 = vmatpush.msra.mxu0 0.0
    %136 = vmatpush.msra.mxu0 0.0
    %137 = vmatpush.msra.mxu0 0.0
    %138 = vmatpush.msra.mxu0 0.0
    %139 = vmatpush.msra.mxu0 0.0
    %140 = vmatpush.msra.mxu0 0.0
    %141 = vmatpush.msra.mxu0 %v124
    %142 = vmatmul.f32.gmra.mxu0 %v99
    %v143 = vpop.f32.mrf.mxu0
    %v144 = vadd.f32 %v60, %v143
    %145 = vmatmul.f32.gmra.mxu0 %v102
    %v146 = vpop.f32.mrf.mxu0
    %v147 = vadd.f32 %v65, %v146
    %148 = vmatmul.f32.gmra.mxu0 %v105
    %v149 = vpop.f32.mrf.mxu0
    %v150 = vadd.f32 %v70, %v149
    %151 = vmatmul.f32.gmra.mxu0 %v108
    %v152 = vpop.f32.mrf.mxu0
    %v153 = vadd.f32 %v75, %v152
    %154 = vmatmul.f32.gmra.mxu0 %v111
    %v155 = vpop.f32.mrf.mxu0
    %v156 = vadd.f32 %v80, %v155
    %157 = vmatmul.f32.gmra.mxu0 %v114
    %v158 = vpop.f32.mrf.mxu0
    %v159 = vadd.f32 %v85, %v158
    %160 = vmatmul.f32.gmra.mxu0 %v117
    %v161 = vpop.f32.mrf.mxu0
    %v162 = vadd.f32 %v90, %v161
    %163 = vmatmul.f32.gmra.mxu0 %v120
    %v164 = vpop.f32.mrf.mxu0
    %v165 = vadd.f32 %v95, %v164
    %166 = vdwg.mxu0
    %v167 = vmax.f32 %v144, 0.0
    %v168 = vmax.f32 %v147, 0.0
    %v169 = vmax.f32 %v150, 0.0
    %v170 = vmax.f32 %v153, 0.0
    %v171 = vmax.f32 %v156, 0.0
    %v172 = vmax.f32 %v159, 0.0
    %v173 = vmax.f32 %v162, 0.0
    %v174 = vmax.f32 %v165, 0.0
    %v175 = vld [vmem:[%s3] sm:$0xf]
    %v176 = vld [vmem:[%s3 + $0x4] sm:$0xf]
    %v177 = vld [vmem:[%s3 + $0x8] sm:$0xf]
    %v178 = vld [vmem:[%s3 + $0xc] sm:$0xf]
    %v179 = vld [vmem:[%s3 + $0x10] sm:$0xf]
    %v180 = vld [vmem:[%s3 + $0x14] sm:$0xf]
    %v181 = vld [vmem:[%s3 + $0x18] sm:$0xf]
    %v182 = vld [vmem:[%s3 + $0x1c] sm:$0xf]
    %v183 = vld [vmem:[%s3 + $0x20] sm:$0xf]
    %v184 = vld [vmem:[%s3 + $0x24] sm:$0xf]
    %v185 = vld [vmem:[%s3 + $0x28] sm:$0xf]
    %v186 = vld [vmem:[%s3 + $0x2c] sm:$0xf]
    %v187 = vld [vmem:[%s3 + $0x30] sm:$0xf]
    %v188 = vld [vmem:[%s3 + $0x34] sm:$0xf]
    %v189 = vld [vmem:[%s3 + $0x38] sm:$0xf]
    %v190 = vld [vmem:[%s3 + $0x3c] sm:$0xf]
    %v191 = vld [vmem:[%s3 + $0x40] sm:$0xf]
    %v192 = vld [vmem:[%s3 + $0x44] sm:$0xf]
    %v193 = vld [vmem:[%s3 + $0x48] sm:$0xf]
    %v194 = vld [vmem:[%s3 + $0x4c] sm:$0xf]
    %v195 = vld [vmem:[%s3 + $0x50] sm:$0xf]
    %v196 = vld [vmem:[%s3 + $0x54] sm:$0xf]
    %v197 = vld [vmem:[%s3 + $0x58] sm:$0xf]
    %v198 = vld [vmem:[%s3 + $0x5c] sm:$0xf]
    %v199 = vld [vmem:[%s3 + $0x60] sm:$0xf]
    %v200 = vld [vmem:[%s3 + $0x64] sm:$0xf]
    %v201 = vld [vmem:[%s3 + $0x68] sm:$0xf]
    %v202 = vld [vmem:[%s3 + $0x6c] sm:$0xf]
    %v203 = vld [vmem:[%s3 + $0x70] sm:$0xf]
    %v204 = vld [vmem:[%s3 + $0x74] sm:$0xf]
    %v205 = vld [vmem:[%s3 + $0x78] sm:$0xf]
    %v206 = vld [vmem:[%s3 + $0x7c] sm:$0xf]
    %v207 = vpack.c.bf16 %v168, %v167
    %v208 = vpack.c.bf16 %v170, %v169
    %v209 = vpack.c.bf16 %v172, %v171
    %v210 = vpack.c.bf16 %v174, %v173
    %v211 = vld [vmem:[%s4] sm:$0xff]
    %v212 = vld [vmem:[%s4 + $0x8] sm:$0xff]
    %v213 = vld [vmem:[%s4 + $0x10] sm:$0xff]
    %v214 = vld [vmem:[%s4 + $0x18] sm:$0xff]
    %v215 = vld [vmem:[%s4 + $0x20] sm:$0xff]
    %v216 = vld [vmem:[%s4 + $0x28] sm:$0xff]
    %v217 = vld [vmem:[%s4 + $0x30] sm:$0xff]
    %v218 = vld [vmem:[%s4 + $0x38] sm:$0xff]
    %v219 = vld [vmem:[%s4 + $0x40] sm:$0xff]
    %v220 = vld [vmem:[%s4 + $0x48] sm:$0xff]
    %v221 = vld [vmem:[%s4 + $0x50] sm:$0xff]
    %v222 = vld [vmem:[%s4 + $0x58] sm:$0xff]
    %v223 = vld [vmem:[%s4 + $0x60] sm:$0xff]
    %v224 = vld [vmem:[%s4 + $0x68] sm:$0xff]
    %v225 = vld [vmem:[%s4 + $0x70] sm:$0xff]
    %v226 = vld [vmem:[%s4 + $0x78] sm:$0xff]
    %v227 = vld [vmem:[%s4 + $0x80] sm:$0xff]
    %v228 = vld [vmem:[%s4 + $0x88] sm:$0xff]
    %v229 = vld [vmem:[%s4 + $0x90] sm:$0xff]
    %v230 = vld [vmem:[%s4 + $0x98] sm:$0xff]
    %v231 = vld [vmem:[%s4 + $0xa0] sm:$0xff]
    %v232 = vld [vmem:[%s4 + $0xa8] sm:$0xff]
    %v233 = vld [vmem:[%s4 + $0xb0] sm:$0xff]
    %v234 = vld [vmem:[%s4 + $0xb8] sm:$0xff]
    %v235 = vld [vmem:[%s4 + $0xc0] sm:$0xff]
    %v236 = vld [vmem:[%s4 + $0xc8] sm:$0xff]
    %v237 = vld [vmem:[%s4 + $0xd0] sm:$0xff]
    %v238 = vld [vmem:[%s4 + $0xd8] sm:$0xff]
    %v239 = vld [vmem:[%s4 + $0xe0] sm:$0xff]
    %v240 = vld [vmem:[%s4 + $0xe8] sm:$0xff]
    %v241 = vld [vmem:[%s4 + $0xf0] sm:$0xff]
    %v242 = vld [vmem:[%s4 + $0xf8] sm:$0xff]
    %244 = vset.pattern.permute.xlu0 0
    %245 = vperm.xlu0 %244, %v211
    %v246 = vpop.permute.xlu0 %245
    %249 = vset.pattern.permute.xlu0 0
    %250 = vperm.xlu0 %249, %v212
    %v251 = vpop.permute.xlu0 %250
    %254 = vset.pattern.permute.xlu0 0
    %255 = vperm.xlu0 %254, %v213
    %v256 = vpop.permute.xlu0 %255
    %259 = vset.pattern.permute.xlu0 0
    %260 = vperm.xlu0 %259, %v214
    %v261 = vpop.permute.xlu0 %260
    %264 = vset.pattern.permute.xlu0 0
    %265 = vperm.xlu0 %264, %v215
    %v266 = vpop.permute.xlu0 %265
    %269 = vset.pattern.permute.xlu0 0
    %270 = vperm.xlu0 %269, %v216
    %v271 = vpop.permute.xlu0 %270
    %274 = vset.pattern.permute.xlu0 0
    %275 = vperm.xlu0 %274, %v217
    %v276 = vpop.permute.xlu0 %275
    %279 = vset.pattern.permute.xlu0 0
    %280 = vperm.xlu0 %279, %v218
    %v281 = vpop.permute.xlu0 %280
    %284 = vset.pattern.permute.xlu0 0
    %285 = vperm.xlu0 %284, %v219
    %v286 = vpop.permute.xlu0 %285
    %289 = vset.pattern.permute.xlu0 0
    %290 = vperm.xlu0 %289, %v220
    %v291 = vpop.permute.xlu0 %290
    %294 = vset.pattern.permute.xlu0 0
    %295 = vperm.xlu0 %294, %v221
    %v296 = vpop.permute.xlu0 %295
    %299 = vset.pattern.permute.xlu0 0
    %300 = vperm.xlu0 %299, %v222
    %v301 = vpop.permute.xlu0 %300
    %304 = vset.pattern.permute.xlu0 0
    %305 = vperm.xlu0 %304, %v223
    %v306 = vpop.permute.xlu0 %305
    %309 = vset.pattern.permute.xlu0 0
    %310 = vperm.xlu0 %309, %v224
    %v311 = vpop.permute.xlu0 %310
    %314 = vset.pattern.permute.xlu0 0
    %315 = vperm.xlu0 %314, %v225
    %v316 = vpop.permute.xlu0 %315
    %319 = vset.pattern.permute.xlu0 0
    %320 = vperm.xlu0 %319, %v226
    %v321 = vpop.permute.xlu0 %320
    %324 = vset.pattern.permute.xlu0 0
    %325 = vperm.xlu0 %324, %v227
    %v326 = vpop.permute.xlu0 %325
    %329 = vset.pattern.permute.xlu0 0
    %330 = vperm.xlu0 %329, %v228
    %v331 = vpop.permute.xlu0 %330
    %334 = vset.pattern.permute.xlu0 0
    %335 = vperm.xlu0 %334, %v229
    %v336 = vpop.permute.xlu0 %335
    %339 = vset.pattern.permute.xlu0 0
    %340 = vperm.xlu0 %339, %v230
    %v341 = vpop.permute.xlu0 %340
    %344 = vset.pattern.permute.xlu0 0
    %345 = vperm.xlu0 %344, %v231
    %v346 = vpop.permute.xlu0 %345
    %349 = vset.pattern.permute.xlu0 0
    %350 = vperm.xlu0 %349, %v232
    %v351 = vpop.permute.xlu0 %350
    %354 = vset.pattern.permute.xlu0 0
    %355 = vperm.xlu0 %354, %v233
    %v356 = vpop.permute.xlu0 %355
    %359 = vset.pattern.permute.xlu0 0
    %360 = vperm.xlu0 %359, %v234
    %v361 = vpop.permute.xlu0 %360
    %364 = vset.pattern.permute.xlu0 0
    %365 = vperm.xlu0 %364, %v235
    %v366 = vpop.permute.xlu0 %365
    %369 = vset.pattern.permute.xlu0 0
    %370 = vperm.xlu0 %369, %v236
    %v371 = vpop.permute.xlu0 %370
    %374 = vset.pattern.permute.xlu0 0
    %375 = vperm.xlu0 %374, %v237
    %v376 = vpop.permute.xlu0 %375
    %379 = vset.pattern.permute.xlu0 0
    %380 = vperm.xlu0 %379, %v238
    %v381 = vpop.permute.xlu0 %380
    %384 = vset.pattern.permute.xlu0 0
    %385 = vperm.xlu0 %384, %v239
    %v386 = vpop.permute.xlu0 %385
    %389 = vset.pattern.permute.xlu0 0
    %390 = vperm.xlu0 %389, %v240
    %v391 = vpop.permute.xlu0 %390
    %394 = vset.pattern.permute.xlu0 0
    %395 = vperm.xlu0 %394, %v241
    %v396 = vpop.permute.xlu0 %395
    %399 = vset.pattern.permute.xlu0 0
    %400 = vperm.xlu0 %399, %v242
    %v401 = vpop.permute.xlu0 %400
    %v435 = vunpack.c.l.b16 %v175
    %v436 = vunpack.c.l.b16 %v176
    %v437 = vunpack.c.l.b16 %v177
    %v438 = vunpack.c.l.b16 %v178
    %v439 = vunpack.c.l.b16 %v179
    %v440 = vunpack.c.l.b16 %v180
    %v441 = vunpack.c.l.b16 %v181
    %v442 = vunpack.c.l.b16 %v182
    %v443 = vunpack.c.l.b16 %v183
    %v444 = vunpack.c.l.b16 %v184
    %v445 = vunpack.c.l.b16 %v185
    %v446 = vunpack.c.l.b16 %v186
    %v447 = vunpack.c.l.b16 %v187
    %v448 = vunpack.c.l.b16 %v188
    %v449 = vunpack.c.l.b16 %v189
    %v450 = vunpack.c.l.b16 %v190
    %v451 = vunpack.c.l.b16 %v191
    %v452 = vunpack.c.l.b16 %v192
    %v453 = vunpack.c.l.b16 %v193
    %v454 = vunpack.c.l.b16 %v194
    %v455 = vunpack.c.l.b16 %v195
    %v456 = vunpack.c.l.b16 %v196
    %v457 = vunpack.c.l.b16 %v197
    %v458 = vunpack.c.l.b16 %v198
    %v459 = vunpack.c.l.b16 %v199
    %v460 = vunpack.c.l.b16 %v200
    %v461 = vunpack.c.l.b16 %v201
    %v462 = vunpack.c.l.b16 %v202
    %v463 = vunpack.c.l.b16 %v203
    %v464 = vunpack.c.l.b16 %v204
    %v465 = vunpack.c.l.b16 %v205
    %v466 = vunpack.c.l.b16 %v206
    %v467 = vpack.c.b16 %v436, %v435
    %v468 = vpack.c.b16 %v438, %v437
    %v469 = vpack.c.b16 %v440, %v439
    %v470 = vpack.c.b16 %v442, %v441
    %v471 = vpack.c.b16 %v444, %v443
    %v472 = vpack.c.b16 %v446, %v445
    %v473 = vpack.c.b16 %v448, %v447
    %v474 = vpack.c.b16 %v450, %v449
    %v475 = vpack.c.b16 %v452, %v451
    %v476 = vpack.c.b16 %v454, %v453
    %v477 = vpack.c.b16 %v456, %v455
    %v478 = vpack.c.b16 %v458, %v457
    %v479 = vpack.c.b16 %v460, %v459
    %v480 = vpack.c.b16 %v462, %v461
    %v481 = vpack.c.b16 %v464, %v463
    %v482 = vpack.c.b16 %v466, %v465
    %vm483 = vcmask 523264
    %v485 = vsel %vm483, %v467, 0
    %v488 = vsel %vm483, %v468, 0
    %v491 = vsel %vm483, %v469, 0
    %v494 = vsel %vm483, %v470, 0
    %v497 = vsel %vm483, %v471, 0
    %v500 = vsel %vm483, %v472, 0
    %v503 = vsel %vm483, %v473, 0
    %v506 = vsel %vm483, %v474, 0
    %v509 = vsel %vm483, %v475, 0
    %v512 = vsel %vm483, %v476, 0
    %v515 = vsel %vm483, %v477, 0
    %v518 = vsel %vm483, %v478, 0
    %v521 = vsel %vm483, %v479, 0
    %v524 = vsel %vm483, %v480, 0
    %v527 = vsel %vm483, %v481, 0
    %v530 = vsel %vm483, %v482, 0
    %532 = vmatpush.bf16.msra.mxu0 0
    %533 = vmatpush.bf16.msra.mxu0 0
    %534 = vmatpush.bf16.msra.mxu0 0
    %535 = vmatpush.bf16.msra.mxu0 0
    %536 = vmatpush.bf16.msra.mxu0 %v210
    %537 = vmatpush.bf16.msra.mxu0 %v209
    %538 = vmatpush.bf16.msra.mxu0 %v208
    %539 = vmatpush.bf16.msra.mxu0 %v207
    %540 = vmatmul.bf16.gmra.mxu0 %v485
    %v541 = vpop.f32.mrf.mxu0
    %v542 = vadd.f32 %v246, %v541
    %v543 = vpop.f32.mrf.mxu0
    %v544 = vadd.f32 %v251, %v543
    %545 = vmatmul.bf16.gmra.mxu0 %v488
    %v546 = vpop.f32.mrf.mxu0
    %v547 = vadd.f32 %v256, %v546
    %v548 = vpop.f32.mrf.mxu0
    %v549 = vadd.f32 %v261, %v548
    %550 = vmatmul.bf16.gmra.mxu0 %v491
    %v551 = vpop.f32.mrf.mxu0
    %v552 = vadd.f32 %v266, %v551
    %v553 = vpop.f32.mrf.mxu0
    %v554 = vadd.f32 %v271, %v553
    %555 = vmatmul.bf16.gmra.mxu0 %v494
    %v556 = vpop.f32.mrf.mxu0
    %v557 = vadd.f32 %v276, %v556
    %v558 = vpop.f32.mrf.mxu0
    %v559 = vadd.f32 %v281, %v558
    %560 = vmatmul.bf16.gmra.mxu0 %v497
    %v561 = vpop.f32.mrf.mxu0
    %v562 = vadd.f32 %v286, %v561
    %v563 = vpop.f32.mrf.mxu0
    %v564 = vadd.f32 %v291, %v563
    %565 = vmatmul.bf16.gmra.mxu0 %v500
    %v566 = vpop.f32.mrf.mxu0
    %v567 = vadd.f32 %v296, %v566
    %v568 = vpop.f32.mrf.mxu0
    %v569 = vadd.f32 %v301, %v568
    %570 = vmatmul.bf16.gmra.mxu0 %v503
    %v571 = vpop.f32.mrf.mxu0
    %v572 = vadd.f32 %v306, %v571
    %v573 = vpop.f32.mrf.mxu0
    %v574 = vadd.f32 %v311, %v573
    %575 = vmatmul.bf16.gmra.mxu0 %v506
    %v576 = vpop.f32.mrf.mxu0
    %v577 = vadd.f32 %v316, %v576
    %v578 = vpop.f32.mrf.mxu0
    %v579 = vadd.f32 %v321, %v578
    %580 = vmatmul.bf16.gmra.mxu0 %v509
    %v581 = vpop.f32.mrf.mxu0
    %v582 = vadd.f32 %v326, %v581
    %v583 = vpop.f32.mrf.mxu0
    %v584 = vadd.f32 %v331, %v583
    %585 = vmatmul.bf16.gmra.mxu0 %v512
    %v586 = vpop.f32.mrf.mxu0
    %v587 = vadd.f32 %v336, %v586
    %v588 = vpop.f32.mrf.mxu0
    %v589 = vadd.f32 %v341, %v588
    %590 = vmatmul.bf16.gmra.mxu0 %v515
    %v591 = vpop.f32.mrf.mxu0
    %v592 = vadd.f32 %v346, %v591
    %v593 = vpop.f32.mrf.mxu0
    %v594 = vadd.f32 %v351, %v593
    %595 = vmatmul.bf16.gmra.mxu0 %v518
    %v596 = vpop.f32.mrf.mxu0
    %v597 = vadd.f32 %v356, %v596
    %v598 = vpop.f32.mrf.mxu0
    %v599 = vadd.f32 %v361, %v598
    %600 = vmatmul.bf16.gmra.mxu0 %v521
    %v601 = vpop.f32.mrf.mxu0
    %v602 = vadd.f32 %v366, %v601
    %v603 = vpop.f32.mrf.mxu0
    %v604 = vadd.f32 %v371, %v603
    %605 = vmatmul.bf16.gmra.mxu0 %v524
    %v606 = vpop.f32.mrf.mxu0
    %v607 = vadd.f32 %v376, %v606
    %v608 = vpop.f32.mrf.mxu0
    %v609 = vadd.f32 %v381, %v608
    %610 = vmatmul.bf16.gmra.mxu0 %v527
    %v611 = vpop.f32.mrf.mxu0
    %v612 = vadd.f32 %v386, %v611
    %v613 = vpop.f32.mrf.mxu0
    %v614 = vadd.f32 %v391, %v613
    %615 = vmatmul.bf16.gmra.mxu0 %v530
    %v616 = vpop.f32.mrf.mxu0
    %v617 = vadd.f32 %v396, %v616
    %v618 = vpop.f32.mrf.mxu0
    %v619 = vadd.f32 %v401, %v618
    %620 = vdwg.mxu0
    %v621 = vmax.f32 %v542, 0.0
    %v622 = vmax.f32 %v544, 0.0
    %v623 = vmax.f32 %v547, 0.0
    %v624 = vmax.f32 %v549, 0.0
    %v625 = vmax.f32 %v552, 0.0
    %v626 = vmax.f32 %v554, 0.0
    %v627 = vmax.f32 %v557, 0.0
    %v628 = vmax.f32 %v559, 0.0
    %v629 = vmax.f32 %v562, 0.0
    %v630 = vmax.f32 %v564, 0.0
    %v631 = vmax.f32 %v567, 0.0
    %v632 = vmax.f32 %v569, 0.0
    %v633 = vmax.f32 %v572, 0.0
    %v634 = vmax.f32 %v574, 0.0
    %v635 = vmax.f32 %v577, 0.0
    %v636 = vmax.f32 %v579, 0.0
    %v637 = vmax.f32 %v582, 0.0
    %v638 = vmax.f32 %v584, 0.0
    %v639 = vmax.f32 %v587, 0.0
    %v640 = vmax.f32 %v589, 0.0
    %v641 = vmax.f32 %v592, 0.0
    %v642 = vmax.f32 %v594, 0.0
    %v643 = vmax.f32 %v597, 0.0
    %v644 = vmax.f32 %v599, 0.0
    %v645 = vmax.f32 %v602, 0.0
    %v646 = vmax.f32 %v604, 0.0
    %v647 = vmax.f32 %v607, 0.0
    %v648 = vmax.f32 %v609, 0.0
    %v649 = vmax.f32 %v612, 0.0
    %v650 = vmax.f32 %v614, 0.0
    %v651 = vmax.f32 %v617, 0.0
    %v652 = vmax.f32 %v619, 0.0
    %v653 = vld [vmem:[%s5] sm:$0xff]
    %v654 = vld [vmem:[%s5 + $0x8] sm:$0xff]
    %v655 = vld [vmem:[%s5 + $0x10] sm:$0xff]
    %v656 = vld [vmem:[%s5 + $0x18] sm:$0xff]
    %v657 = vld [vmem:[%s5 + $0x20] sm:$0xff]
    %v658 = vld [vmem:[%s5 + $0x28] sm:$0xff]
    %v659 = vld [vmem:[%s5 + $0x30] sm:$0xff]
    %v660 = vld [vmem:[%s5 + $0x38] sm:$0xff]
    %v661 = vld [vmem:[%s5 + $0x40] sm:$0xff]
    %v662 = vld [vmem:[%s5 + $0x48] sm:$0xff]
    %v663 = vld [vmem:[%s5 + $0x50] sm:$0xff]
    %v664 = vld [vmem:[%s5 + $0x58] sm:$0xff]
    %v665 = vld [vmem:[%s5 + $0x60] sm:$0xff]
    %v666 = vld [vmem:[%s5 + $0x68] sm:$0xff]
    %v667 = vld [vmem:[%s5 + $0x70] sm:$0xff]
    %v668 = vld [vmem:[%s5 + $0x78] sm:$0xff]
    %v669 = vld [vmem:[%s5 + $0x80] sm:$0xff]
    %v670 = vld [vmem:[%s5 + $0x88] sm:$0xff]
    %v671 = vld [vmem:[%s5 + $0x90] sm:$0xff]
    %v672 = vld [vmem:[%s5 + $0x98] sm:$0xff]
    %v673 = vld [vmem:[%s5 + $0xa0] sm:$0xff]
    %v674 = vld [vmem:[%s5 + $0xa8] sm:$0xff]
    %v675 = vld [vmem:[%s5 + $0xb0] sm:$0xff]
    %v676 = vld [vmem:[%s5 + $0xb8] sm:$0xff]
    %v677 = vld [vmem:[%s5 + $0xc0] sm:$0xff]
    %v678 = vld [vmem:[%s5 + $0xc8] sm:$0xff]
    %v679 = vld [vmem:[%s5 + $0xd0] sm:$0xff]
    %v680 = vld [vmem:[%s5 + $0xd8] sm:$0xff]
    %v681 = vld [vmem:[%s5 + $0xe0] sm:$0xff]
    %v682 = vld [vmem:[%s5 + $0xe8] sm:$0xff]
    %v683 = vld [vmem:[%s5 + $0xf0] sm:$0xff]
    %v684 = vld [vmem:[%s5 + $0xf8] sm:$0xff]
    %v685 = vpack.c.bf16 %v622, %v621
    %v686 = vpack.c.bf16 %v624, %v623
    %v687 = vpack.c.bf16 %v626, %v625
    %v688 = vpack.c.bf16 %v628, %v627
    %v689 = vpack.c.bf16 %v630, %v629
    %v690 = vpack.c.bf16 %v632, %v631
    %v691 = vpack.c.bf16 %v634, %v633
    %v692 = vpack.c.bf16 %v636, %v635
    %v693 = vpack.c.bf16 %v638, %v637
    %v694 = vpack.c.bf16 %v640, %v639
    %v695 = vpack.c.bf16 %v642, %v641
    %v696 = vpack.c.bf16 %v644, %v643
    %v697 = vpack.c.bf16 %v646, %v645
    %v698 = vpack.c.bf16 %v648, %v647
    %v699 = vpack.c.bf16 %v650, %v649
    %v700 = vpack.c.bf16 %v652, %v651
    %v701 = vld [vmem:[%s6] sm:$0xff]
    %v702 = vld [vmem:[%s6 + $0x8] sm:$0xff]
    %v703 = vld [vmem:[%s6 + $0x10] sm:$0xff]
    %v704 = vld [vmem:[%s6 + $0x18] sm:$0xff]
    %v705 = vld [vmem:[%s6 + $0x20] sm:$0xff]
    %v706 = vld [vmem:[%s6 + $0x28] sm:$0xff]
    %v707 = vld [vmem:[%s6 + $0x30] sm:$0xff]
    %v708 = vld [vmem:[%s6 + $0x38] sm:$0xff]
    %v709 = vld [vmem:[%s6 + $0x40] sm:$0xff]
    %v710 = vld [vmem:[%s6 + $0x48] sm:$0xff]
    %v711 = vld [vmem:[%s6 + $0x50] sm:$0xff]
    %v712 = vld [vmem:[%s6 + $0x58] sm:$0xff]
    %v713 = vld [vmem:[%s6 + $0x60] sm:$0xff]
    %v714 = vld [vmem:[%s6 + $0x68] sm:$0xff]
    %v715 = vld [vmem:[%s6 + $0x70] sm:$0xff]
    %v716 = vld [vmem:[%s6 + $0x78] sm:$0xff]
    %v717 = vld [vmem:[%s6 + $0x80] sm:$0xff]
    %v718 = vld [vmem:[%s6 + $0x88] sm:$0xff]
    %v719 = vld [vmem:[%s6 + $0x90] sm:$0xff]
    %v720 = vld [vmem:[%s6 + $0x98] sm:$0xff]
    %v721 = vld [vmem:[%s6 + $0xa0] sm:$0xff]
    %v722 = vld [vmem:[%s6 + $0xa8] sm:$0xff]
    %v723 = vld [vmem:[%s6 + $0xb0] sm:$0xff]
    %v724 = vld [vmem:[%s6 + $0xb8] sm:$0xff]
    %v725 = vld [vmem:[%s6 + $0xc0] sm:$0xff]
    %v726 = vld [vmem:[%s6 + $0xc8] sm:$0xff]
    %v727 = vld [vmem:[%s6 + $0xd0] sm:$0xff]
    %v728 = vld [vmem:[%s6 + $0xd8] sm:$0xff]
    %v729 = vld [vmem:[%s6 + $0xe0] sm:$0xff]
    %v730 = vld [vmem:[%s6 + $0xe8] sm:$0xff]
    %v731 = vld [vmem:[%s6 + $0xf0] sm:$0xff]
    %v732 = vld [vmem:[%s6 + $0xf8] sm:$0xff]
    %734 = vset.pattern.permute.xlu0 0
    %735 = vperm.xlu0 %734, %v701
    %v736 = vpop.permute.xlu0 %735
    %739 = vset.pattern.permute.xlu0 0
    %740 = vperm.xlu0 %739, %v702
    %v741 = vpop.permute.xlu0 %740
    %744 = vset.pattern.permute.xlu0 0
    %745 = vperm.xlu0 %744, %v703
    %v746 = vpop.permute.xlu0 %745
    %749 = vset.pattern.permute.xlu0 0
    %750 = vperm.xlu0 %749, %v704
    %v751 = vpop.permute.xlu0 %750
    %754 = vset.pattern.permute.xlu0 0
    %755 = vperm.xlu0 %754, %v705
    %v756 = vpop.permute.xlu0 %755
    %759 = vset.pattern.permute.xlu0 0
    %760 = vperm.xlu0 %759, %v706
    %v761 = vpop.permute.xlu0 %760
    %764 = vset.pattern.permute.xlu0 0
    %765 = vperm.xlu0 %764, %v707
    %v766 = vpop.permute.xlu0 %765
    %769 = vset.pattern.permute.xlu0 0
    %770 = vperm.xlu0 %769, %v708
    %v771 = vpop.permute.xlu0 %770
    %774 = vset.pattern.permute.xlu0 0
    %775 = vperm.xlu0 %774, %v709
    %v776 = vpop.permute.xlu0 %775
    %779 = vset.pattern.permute.xlu0 0
    %780 = vperm.xlu0 %779, %v710
    %v781 = vpop.permute.xlu0 %780
    %784 = vset.pattern.permute.xlu0 0
    %785 = vperm.xlu0 %784, %v711
    %v786 = vpop.permute.xlu0 %785
    %789 = vset.pattern.permute.xlu0 0
    %790 = vperm.xlu0 %789, %v712
    %v791 = vpop.permute.xlu0 %790
    %794 = vset.pattern.permute.xlu0 0
    %795 = vperm.xlu0 %794, %v713
    %v796 = vpop.permute.xlu0 %795
    %799 = vset.pattern.permute.xlu0 0
    %800 = vperm.xlu0 %799, %v714
    %v801 = vpop.permute.xlu0 %800
    %804 = vset.pattern.permute.xlu0 0
    %805 = vperm.xlu0 %804, %v715
    %v806 = vpop.permute.xlu0 %805
    %809 = vset.pattern.permute.xlu0 0
    %810 = vperm.xlu0 %809, %v716
    %v811 = vpop.permute.xlu0 %810
    %814 = vset.pattern.permute.xlu0 0
    %815 = vperm.xlu0 %814, %v717
    %v816 = vpop.permute.xlu0 %815
    %819 = vset.pattern.permute.xlu0 0
    %820 = vperm.xlu0 %819, %v718
    %v821 = vpop.permute.xlu0 %820
    %824 = vset.pattern.permute.xlu0 0
    %825 = vperm.xlu0 %824, %v719
    %v826 = vpop.permute.xlu0 %825
    %829 = vset.pattern.permute.xlu0 0
    %830 = vperm.xlu0 %829, %v720
    %v831 = vpop.permute.xlu0 %830
    %834 = vset.pattern.permute.xlu0 0
    %835 = vperm.xlu0 %834, %v721
    %v836 = vpop.permute.xlu0 %835
    %839 = vset.pattern.permute.xlu0 0
    %840 = vperm.xlu0 %839, %v722
    %v841 = vpop.permute.xlu0 %840
    %844 = vset.pattern.permute.xlu0 0
    %845 = vperm.xlu0 %844, %v723
    %v846 = vpop.permute.xlu0 %845
    %849 = vset.pattern.permute.xlu0 0
    %850 = vperm.xlu0 %849, %v724
    %v851 = vpop.permute.xlu0 %850
    %854 = vset.pattern.permute.xlu0 0
    %855 = vperm.xlu0 %854, %v725
    %v856 = vpop.permute.xlu0 %855
    %859 = vset.pattern.permute.xlu0 0
    %860 = vperm.xlu0 %859, %v726
    %v861 = vpop.permute.xlu0 %860
    %864 = vset.pattern.permute.xlu0 0
    %865 = vperm.xlu0 %864, %v727
    %v866 = vpop.permute.xlu0 %865
    %869 = vset.pattern.permute.xlu0 0
    %870 = vperm.xlu0 %869, %v728
    %v871 = vpop.permute.xlu0 %870
    %874 = vset.pattern.permute.xlu0 0
    %875 = vperm.xlu0 %874, %v729
    %v876 = vpop.permute.xlu0 %875
    %879 = vset.pattern.permute.xlu0 0
    %880 = vperm.xlu0 %879, %v730
    %v881 = vpop.permute.xlu0 %880
    %884 = vset.pattern.permute.xlu0 0
    %885 = vperm.xlu0 %884, %v731
    %v886 = vpop.permute.xlu0 %885
    %889 = vset.pattern.permute.xlu0 0
    %890 = vperm.xlu0 %889, %v732
    %v891 = vpop.permute.xlu0 %890
    %v925 = vunpack.c.l.b16 %v653
    %v926 = vunpack.c.h.b16 %v653
    %v927 = vunpack.c.l.b16 %v654
    %v928 = vunpack.c.h.b16 %v654
    %v929 = vunpack.c.l.b16 %v655
    %v930 = vunpack.c.h.b16 %v655
    %v931 = vunpack.c.l.b16 %v656
    %v932 = vunpack.c.h.b16 %v656
    %v933 = vunpack.c.l.b16 %v657
    %v934 = vunpack.c.h.b16 %v657
    %v935 = vunpack.c.l.b16 %v658
    %v936 = vunpack.c.h.b16 %v658
    %v937 = vunpack.c.l.b16 %v659
    %v938 = vunpack.c.h.b16 %v659
    %v939 = vunpack.c.l.b16 %v660
    %v940 = vunpack.c.h.b16 %v660
    %v941 = vunpack.c.l.b16 %v661
    %v942 = vunpack.c.h.b16 %v661
    %v943 = vunpack.c.l.b16 %v662
    %v944 = vunpack.c.h.b16 %v662
    %v945 = vunpack.c.l.b16 %v663
    %v946 = vunpack.c.h.b16 %v663
    %v947 = vunpack.c.l.b16 %v664
    %v948 = vunpack.c.h.b16 %v664
    %v949 = vunpack.c.l.b16 %v665
    %v950 = vunpack.c.h.b16 %v665
    %v951 = vunpack.c.l.b16 %v666
    %v952 = vunpack.c.h.b16 %v666
    %v953 = vunpack.c.l.b16 %v667
    %v954 = vunpack.c.h.b16 %v667
    %v955 = vunpack.c.l.b16 %v668
    %v956 = vunpack.c.h.b16 %v668
    %v957 = vunpack.c.l.b16 %v669
    %v958 = vunpack.c.h.b16 %v669
    %v959 = vunpack.c.l.b16 %v670
    %v960 = vunpack.c.h.b16 %v670
    %v961 = vunpack.c.l.b16 %v671
    %v962 = vunpack.c.h.b16 %v671
    %v963 = vunpack.c.l.b16 %v672
    %v964 = vunpack.c.h.b16 %v672
    %v965 = vunpack.c.l.b16 %v673
    %v966 = vunpack.c.h.b16 %v673
    %v967 = vunpack.c.l.b16 %v674
    %v968 = vunpack.c.h.b16 %v674
    %v969 = vunpack.c.l.b16 %v675
    %v970 = vunpack.c.h.b16 %v675
    %v971 = vunpack.c.l.b16 %v676
    %v972 = vunpack.c.h.b16 %v676
    %v973 = vunpack.c.l.b16 %v677
    %v974 = vunpack.c.h.b16 %v677
    %v975 = vunpack.c.l.b16 %v678
    %v976 = vunpack.c.h.b16 %v678
    %v977 = vunpack.c.l.b16 %v679
    %v978 = vunpack.c.h.b16 %v679
    %v979 = vunpack.c.l.b16 %v680
    %v980 = vunpack.c.h.b16 %v680
    %v981 = vunpack.c.l.b16 %v681
    %v982 = vunpack.c.h.b16 %v681
    %v983 = vunpack.c.l.b16 %v682
    %v984 = vunpack.c.h.b16 %v682
    %v985 = vunpack.c.l.b16 %v683
    %v986 = vunpack.c.h.b16 %v683
    %v987 = vunpack.c.l.b16 %v684
    %v988 = vunpack.c.h.b16 %v684
    %v989 = vpack.c.b16 %v927, %v925
    %v990 = vpack.c.b16 %v928, %v926
    %v991 = vpack.c.b16 %v931, %v929
    %v992 = vpack.c.b16 %v932, %v930
    %v993 = vpack.c.b16 %v935, %v933
    %v994 = vpack.c.b16 %v936, %v934
    %v995 = vpack.c.b16 %v939, %v937
    %v996 = vpack.c.b16 %v940, %v938
    %v997 = vpack.c.b16 %v943, %v941
    %v998 = vpack.c.b16 %v944, %v942
    %v999 = vpack.c.b16 %v947, %v945
    %v1000 = vpack.c.b16 %v948, %v946
    %v1001 = vpack.c.b16 %v951, %v949
    %v1002 = vpack.c.b16 %v952, %v950
    %v1003 = vpack.c.b16 %v955, %v953
    %v1004 = vpack.c.b16 %v956, %v954
    %v1005 = vpack.c.b16 %v959, %v957
    %v1006 = vpack.c.b16 %v960, %v958
    %v1007 = vpack.c.b16 %v963, %v961
    %v1008 = vpack.c.b16 %v964, %v962
    %v1009 = vpack.c.b16 %v967, %v965
    %v1010 = vpack.c.b16 %v968, %v966
    %v1011 = vpack.c.b16 %v971, %v969
    %v1012 = vpack.c.b16 %v972, %v970
    %v1013 = vpack.c.b16 %v975, %v973
    %v1014 = vpack.c.b16 %v976, %v974
    %v1015 = vpack.c.b16 %v979, %v977
    %v1016 = vpack.c.b16 %v980, %v978
    %v1017 = vpack.c.b16 %v983, %v981
    %v1018 = vpack.c.b16 %v984, %v982
    %v1019 = vpack.c.b16 %v987, %v985
    %v1020 = vpack.c.b16 %v988, %v986
    %1053 = vmatpush.bf16.msra.mxu0 %v692
    %1054 = vmatpush.bf16.msra.mxu0 %v691
    %1055 = vmatpush.bf16.msra.mxu0 %v690
    %1056 = vmatpush.bf16.msra.mxu0 %v689
    %1057 = vmatpush.bf16.msra.mxu0 %v688
    %1058 = vmatpush.bf16.msra.mxu0 %v687
    %1059 = vmatpush.bf16.msra.mxu0 %v686
    %1060 = vmatpush.bf16.msra.mxu0 %v685
    %1061 = vmatmul.bf16.gmra.mxu0 %v989
    %v1062 = vpop.f32.mrf.mxu0
    %v1063 = vadd.f32 %v736, %v1062
    %v1064 = vpop.f32.mrf.mxu0
    %v1065 = vadd.f32 %v741, %v1064
    %1066 = vmatmul.bf16.gmra.mxu0 %v991
    %v1067 = vpop.f32.mrf.mxu0
    %v1068 = vadd.f32 %v746, %v1067
    %v1069 = vpop.f32.mrf.mxu0
    %v1070 = vadd.f32 %v751, %v1069
    %1071 = vmatmul.bf16.gmra.mxu0 %v993
    %v1072 = vpop.f32.mrf.mxu0
    %v1073 = vadd.f32 %v756, %v1072
    %v1074 = vpop.f32.mrf.mxu0
    %v1075 = vadd.f32 %v761, %v1074
    %1076 = vmatmul.bf16.gmra.mxu0 %v995
    %v1077 = vpop.f32.mrf.mxu0
    %v1078 = vadd.f32 %v766, %v1077
    %v1079 = vpop.f32.mrf.mxu0
    %v1080 = vadd.f32 %v771, %v1079
    %1081 = vmatmul.bf16.gmra.mxu0 %v997
    %v1082 = vpop.f32.mrf.mxu0
    %v1083 = vadd.f32 %v776, %v1082
    %v1084 = vpop.f32.mrf.mxu0
    %v1085 = vadd.f32 %v781, %v1084
    %1086 = vmatmul.bf16.gmra.mxu0 %v999
    %v1087 = vpop.f32.mrf.mxu0
    %v1088 = vadd.f32 %v786, %v1087
    %v1089 = vpop.f32.mrf.mxu0
    %v1090 = vadd.f32 %v791, %v1089
    %1091 = vmatmul.bf16.gmra.mxu0 %v1001
    %v1092 = vpop.f32.mrf.mxu0
    %v1093 = vadd.f32 %v796, %v1092
    %v1094 = vpop.f32.mrf.mxu0
    %v1095 = vadd.f32 %v801, %v1094
    %1096 = vmatmul.bf16.gmra.mxu0 %v1003
    %v1097 = vpop.f32.mrf.mxu0
    %v1098 = vadd.f32 %v806, %v1097
    %v1099 = vpop.f32.mrf.mxu0
    %v1100 = vadd.f32 %v811, %v1099
    %1101 = vmatmul.bf16.gmra.mxu0 %v1005
    %v1102 = vpop.f32.mrf.mxu0
    %v1103 = vadd.f32 %v816, %v1102
    %v1104 = vpop.f32.mrf.mxu0
    %v1105 = vadd.f32 %v821, %v1104
    %1106 = vmatmul.bf16.gmra.mxu0 %v1007
    %v1107 = vpop.f32.mrf.mxu0
    %v1108 = vadd.f32 %v826, %v1107
    %v1109 = vpop.f32.mrf.mxu0
    %v1110 = vadd.f32 %v831, %v1109
    %1111 = vmatmul.bf16.gmra.mxu0 %v1009
    %v1112 = vpop.f32.mrf.mxu0
    %v1113 = vadd.f32 %v836, %v1112
    %v1114 = vpop.f32.mrf.mxu0
    %v1115 = vadd.f32 %v841, %v1114
    %1116 = vmatmul.bf16.gmra.mxu0 %v1011
    %v1117 = vpop.f32.mrf.mxu0
    %v1118 = vadd.f32 %v846, %v1117
    %v1119 = vpop.f32.mrf.mxu0
    %v1120 = vadd.f32 %v851, %v1119
    %1121 = vmatmul.bf16.gmra.mxu0 %v1013
    %v1122 = vpop.f32.mrf.mxu0
    %v1123 = vadd.f32 %v856, %v1122
    %v1124 = vpop.f32.mrf.mxu0
    %v1125 = vadd.f32 %v861, %v1124
    %1126 = vmatmul.bf16.gmra.mxu0 %v1015
    %v1127 = vpop.f32.mrf.mxu0
    %v1128 = vadd.f32 %v866, %v1127
    %v1129 = vpop.f32.mrf.mxu0
    %v1130 = vadd.f32 %v871, %v1129
    %1131 = vmatmul.bf16.gmra.mxu0 %v1017
    %v1132 = vpop.f32.mrf.mxu0
    %v1133 = vadd.f32 %v876, %v1132
    %v1134 = vpop.f32.mrf.mxu0
    %v1135 = vadd.f32 %v881, %v1134
    %1136 = vmatmul.bf16.gmra.mxu0 %v1019
    %v1137 = vpop.f32.mrf.mxu0
    %v1138 = vadd.f32 %v886, %v1137
    %v1139 = vpop.f32.mrf.mxu0
    %v1140 = vadd.f32 %v891, %v1139
    %1141 = vdwg.mxu0
    %1142 = vmatpush.bf16.msra.mxu0 %v700
    %1143 = vmatpush.bf16.msra.mxu0 %v699
    %1144 = vmatpush.bf16.msra.mxu0 %v698
    %1145 = vmatpush.bf16.msra.mxu0 %v697
    %1146 = vmatpush.bf16.msra.mxu0 %v696
    %1147 = vmatpush.bf16.msra.mxu0 %v695
    %1148 = vmatpush.bf16.msra.mxu0 %v694
    %1149 = vmatpush.bf16.msra.mxu0 %v693
    %1150 = vmatmul.bf16.gmra.mxu0 %v990
    %v1151 = vpop.f32.mrf.mxu0
    %v1152 = vadd.f32 %v1063, %v1151
    %v1153 = vpop.f32.mrf.mxu0
    %v1154 = vadd.f32 %v1065, %v1153
    %1155 = vmatmul.bf16.gmra.mxu0 %v992
    %v1156 = vpop.f32.mrf.mxu0
    %v1157 = vadd.f32 %v1068, %v1156
    %v1158 = vpop.f32.mrf.mxu0
    %v1159 = vadd.f32 %v1070, %v1158
    %1160 = vmatmul.bf16.gmra.mxu0 %v994
    %v1161 = vpop.f32.mrf.mxu0
    %v1162 = vadd.f32 %v1073, %v1161
    %v1163 = vpop.f32.mrf.mxu0
    %v1164 = vadd.f32 %v1075, %v1163
    %1165 = vmatmul.bf16.gmra.mxu0 %v996
    %v1166 = vpop.f32.mrf.mxu0
    %v1167 = vadd.f32 %v1078, %v1166
    %v1168 = vpop.f32.mrf.mxu0
    %v1169 = vadd.f32 %v1080, %v1168
    %1170 = vmatmul.bf16.gmra.mxu0 %v998
    %v1171 = vpop.f32.mrf.mxu0
    %v1172 = vadd.f32 %v1083, %v1171
    %v1173 = vpop.f32.mrf.mxu0
    %v1174 = vadd.f32 %v1085, %v1173
    %1175 = vmatmul.bf16.gmra.mxu0 %v1000
    %v1176 = vpop.f32.mrf.mxu0
    %v1177 = vadd.f32 %v1088, %v1176
    %v1178 = vpop.f32.mrf.mxu0
    %v1179 = vadd.f32 %v1090, %v1178
    %1180 = vmatmul.bf16.gmra.mxu0 %v1002
    %v1181 = vpop.f32.mrf.mxu0
    %v1182 = vadd.f32 %v1093, %v1181
    %v1183 = vpop.f32.mrf.mxu0
    %v1184 = vadd.f32 %v1095, %v1183
    %1185 = vmatmul.bf16.gmra.mxu0 %v1004
    %v1186 = vpop.f32.mrf.mxu0
    %v1187 = vadd.f32 %v1098, %v1186
    %v1188 = vpop.f32.mrf.mxu0
    %v1189 = vadd.f32 %v1100, %v1188
    %1190 = vmatmul.bf16.gmra.mxu0 %v1006
    %v1191 = vpop.f32.mrf.mxu0
    %v1192 = vadd.f32 %v1103, %v1191
    %v1193 = vpop.f32.mrf.mxu0
    %v1194 = vadd.f32 %v1105, %v1193
    %1195 = vmatmul.bf16.gmra.mxu0 %v1008
    %v1196 = vpop.f32.mrf.mxu0
    %v1197 = vadd.f32 %v1108, %v1196
    %v1198 = vpop.f32.mrf.mxu0
    %v1199 = vadd.f32 %v1110, %v1198
    %1200 = vmatmul.bf16.gmra.mxu0 %v1010
    %v1201 = vpop.f32.mrf.mxu0
    %v1202 = vadd.f32 %v1113, %v1201
    %v1203 = vpop.f32.mrf.mxu0
    %v1204 = vadd.f32 %v1115, %v1203
    %1205 = vmatmul.bf16.gmra.mxu0 %v1012
    %v1206 = vpop.f32.mrf.mxu0
    %v1207 = vadd.f32 %v1118, %v1206
    %v1208 = vpop.f32.mrf.mxu0
    %v1209 = vadd.f32 %v1120, %v1208
    %1210 = vmatmul.bf16.gmra.mxu0 %v1014
    %v1211 = vpop.f32.mrf.mxu0
    %v1212 = vadd.f32 %v1123, %v1211
    %v1213 = vpop.f32.mrf.mxu0
    %v1214 = vadd.f32 %v1125, %v1213
    %1215 = vmatmul.bf16.gmra.mxu0 %v1016
    %v1216 = vpop.f32.mrf.mxu0
    %v1217 = vadd.f32 %v1128, %v1216
    %v1218 = vpop.f32.mrf.mxu0
    %v1219 = vadd.f32 %v1130, %v1218
    %1220 = vmatmul.bf16.gmra.mxu0 %v1018
    %v1221 = vpop.f32.mrf.mxu0
    %v1222 = vadd.f32 %v1133, %v1221
    %v1223 = vpop.f32.mrf.mxu0
    %v1224 = vadd.f32 %v1135, %v1223
    %1225 = vmatmul.bf16.gmra.mxu0 %v1020
    %v1226 = vpop.f32.mrf.mxu0
    %v1227 = vadd.f32 %v1138, %v1226
    %v1228 = vpop.f32.mrf.mxu0
    %v1229 = vadd.f32 %v1140, %v1228
    %1230 = vdwg.mxu0
    %v1231 = vmax.f32 %v1152, 0.0
    %v1232 = vmax.f32 %v1154, 0.0
    %v1233 = vmax.f32 %v1157, 0.0
    %v1234 = vmax.f32 %v1159, 0.0
    %v1235 = vmax.f32 %v1162, 0.0
    %v1236 = vmax.f32 %v1164, 0.0
    %v1237 = vmax.f32 %v1167, 0.0
    %v1238 = vmax.f32 %v1169, 0.0
    %v1239 = vmax.f32 %v1172, 0.0
    %v1240 = vmax.f32 %v1174, 0.0
    %v1241 = vmax.f32 %v1177, 0.0
    %v1242 = vmax.f32 %v1179, 0.0
    %v1243 = vmax.f32 %v1182, 0.0
    %v1244 = vmax.f32 %v1184, 0.0
    %v1245 = vmax.f32 %v1187, 0.0
    %v1246 = vmax.f32 %v1189, 0.0
    %v1247 = vmax.f32 %v1192, 0.0
    %v1248 = vmax.f32 %v1194, 0.0
    %v1249 = vmax.f32 %v1197, 0.0
    %v1250 = vmax.f32 %v1199, 0.0
    %v1251 = vmax.f32 %v1202, 0.0
    %v1252 = vmax.f32 %v1204, 0.0
    %v1253 = vmax.f32 %v1207, 0.0
    %v1254 = vmax.f32 %v1209, 0.0
    %v1255 = vmax.f32 %v1212, 0.0
    %v1256 = vmax.f32 %v1214, 0.0
    %v1257 = vmax.f32 %v1217, 0.0
    %v1258 = vmax.f32 %v1219, 0.0
    %v1259 = vmax.f32 %v1222, 0.0
    %v1260 = vmax.f32 %v1224, 0.0
    %v1261 = vmax.f32 %v1227, 0.0
    %v1262 = vmax.f32 %v1229, 0.0
    %v1263 = vld [vmem:[%s7] sm:$0xff]
    %v1264 = vld [vmem:[%s7 + $0x8] sm:$0xff]
    %v1265 = vld [vmem:[%s7 + $0x10] sm:$0xff]
    %v1266 = vld [vmem:[%s7 + $0x18] sm:$0xff]
    %v1267 = vld [vmem:[%s7 + $0x20] sm:$0xff]
    %v1268 = vld [vmem:[%s7 + $0x28] sm:$0xff]
    %v1269 = vld [vmem:[%s7 + $0x30] sm:$0xff]
    %v1270 = vld [vmem:[%s7 + $0x38] sm:$0xff]
    %v1271 = vpack.c.bf16 %v1232, %v1231
    %v1272 = vpack.c.bf16 %v1234, %v1233
    %v1273 = vpack.c.bf16 %v1236, %v1235
    %v1274 = vpack.c.bf16 %v1238, %v1237
    %v1275 = vpack.c.bf16 %v1240, %v1239
    %v1276 = vpack.c.bf16 %v1242, %v1241
    %v1277 = vpack.c.bf16 %v1244, %v1243
    %v1278 = vpack.c.bf16 %v1246, %v1245
    %v1279 = vpack.c.bf16 %v1248, %v1247
    %v1280 = vpack.c.bf16 %v1250, %v1249
    %v1281 = vpack.c.bf16 %v1252, %v1251
    %v1282 = vpack.c.bf16 %v1254, %v1253
    %v1283 = vpack.c.bf16 %v1256, %v1255
    %v1284 = vpack.c.bf16 %v1258, %v1257
    %v1285 = vpack.c.bf16 %v1260, %v1259
    %v1286 = vpack.c.bf16 %v1262, %v1261
    %v1287 = vld [vmem:[%s8] sm:$0xff]
    %v1288 = vld [vmem:[%s8 + $0x8] sm:$0xff]
    %v1289 = vld [vmem:[%s8 + $0x10] sm:$0xff]
    %v1290 = vld [vmem:[%s8 + $0x18] sm:$0xff]
    %v1291 = vld [vmem:[%s8 + $0x20] sm:$0xff]
    %v1292 = vld [vmem:[%s8 + $0x28] sm:$0xff]
    %v1293 = vld [vmem:[%s8 + $0x30] sm:$0xff]
    %v1294 = vld [vmem:[%s8 + $0x38] sm:$0xff]
    %1296 = vset.pattern.permute.xlu0 0
    %1297 = vperm.xlu0 %1296, %v1287
    %v1298 = vpop.permute.xlu0 %1297
    %1301 = vset.pattern.permute.xlu0 0
    %1302 = vperm.xlu0 %1301, %v1288
    %v1303 = vpop.permute.xlu0 %1302
    %1306 = vset.pattern.permute.xlu0 0
    %1307 = vperm.xlu0 %1306, %v1289
    %v1308 = vpop.permute.xlu0 %1307
    %1311 = vset.pattern.permute.xlu0 0
    %1312 = vperm.xlu0 %1311, %v1290
    %v1313 = vpop.permute.xlu0 %1312
    %1316 = vset.pattern.permute.xlu0 0
    %1317 = vperm.xlu0 %1316, %v1291
    %v1318 = vpop.permute.xlu0 %1317
    %1321 = vset.pattern.permute.xlu0 0
    %1322 = vperm.xlu0 %1321, %v1292
    %v1323 = vpop.permute.xlu0 %1322
    %1326 = vset.pattern.permute.xlu0 0
    %1327 = vperm.xlu0 %1326, %v1293
    %v1328 = vpop.permute.xlu0 %1327
    %1331 = vset.pattern.permute.xlu0 0
    %1332 = vperm.xlu0 %1331, %v1294
    %v1333 = vpop.permute.xlu0 %1332
    %v1343 = vunpack.c.l.b16 %v1263
    %v1344 = vunpack.c.h.b16 %v1263
    %v1345 = vunpack.c.l.b16 %v1264
    %v1346 = vunpack.c.h.b16 %v1264
    %v1347 = vunpack.c.l.b16 %v1265
    %v1348 = vunpack.c.h.b16 %v1265
    %v1349 = vunpack.c.l.b16 %v1266
    %v1350 = vunpack.c.h.b16 %v1266
    %v1351 = vunpack.c.l.b16 %v1267
    %v1352 = vunpack.c.h.b16 %v1267
    %v1353 = vunpack.c.l.b16 %v1268
    %v1354 = vunpack.c.h.b16 %v1268
    %v1355 = vunpack.c.l.b16 %v1269
    %v1356 = vunpack.c.h.b16 %v1269
    %v1357 = vunpack.c.l.b16 %v1270
    %v1358 = vunpack.c.h.b16 %v1270
    %v1359 = vpack.c.b16 %v1345, %v1343
    %v1360 = vpack.c.b16 %v1346, %v1344
    %v1361 = vpack.c.b16 %v1349, %v1347
    %v1362 = vpack.c.b16 %v1350, %v1348
    %v1363 = vpack.c.b16 %v1353, %v1351
    %v1364 = vpack.c.b16 %v1354, %v1352
    %v1365 = vpack.c.b16 %v1357, %v1355
    %v1366 = vpack.c.b16 %v1358, %v1356
    %1375 = vmatpush.bf16.msra.mxu0 %v1278
    %1376 = vmatpush.bf16.msra.mxu0 %v1277
    %1377 = vmatpush.bf16.msra.mxu0 %v1276
    %1378 = vmatpush.bf16.msra.mxu0 %v1275
    %1379 = vmatpush.bf16.msra.mxu0 %v1274
    %1380 = vmatpush.bf16.msra.mxu0 %v1273
    %1381 = vmatpush.bf16.msra.mxu0 %v1272
    %1382 = vmatpush.bf16.msra.mxu0 %v1271
    %1383 = vmatmul.bf16.gmra.mxu0 %v1359
    %v1384 = vpop.f32.mrf.mxu0
    %v1385 = vadd.f32 %v1298, %v1384
    %v1386 = vpop.f32.mrf.mxu0
    %v1387 = vadd.f32 %v1303, %v1386
    %1388 = vmatmul.bf16.gmra.mxu0 %v1361
    %v1389 = vpop.f32.mrf.mxu0
    %v1390 = vadd.f32 %v1308, %v1389
    %v1391 = vpop.f32.mrf.mxu0
    %v1392 = vadd.f32 %v1313, %v1391
    %1393 = vmatmul.bf16.gmra.mxu0 %v1363
    %v1394 = vpop.f32.mrf.mxu0
    %v1395 = vadd.f32 %v1318, %v1394
    %v1396 = vpop.f32.mrf.mxu0
    %v1397 = vadd.f32 %v1323, %v1396
    %1398 = vmatmul.bf16.gmra.mxu0 %v1365
    %v1399 = vpop.f32.mrf.mxu0
    %v1400 = vadd.f32 %v1328, %v1399
    %v1401 = vpop.f32.mrf.mxu0
    %v1402 = vadd.f32 %v1333, %v1401
    %1403 = vdwg.mxu0
    %1404 = vmatpush.bf16.msra.mxu0 %v1286
    %1405 = vmatpush.bf16.msra.mxu0 %v1285
    %1406 = vmatpush.bf16.msra.mxu0 %v1284
    %1407 = vmatpush.bf16.msra.mxu0 %v1283
    %1408 = vmatpush.bf16.msra.mxu0 %v1282
    %1409 = vmatpush.bf16.msra.mxu0 %v1281
    %1410 = vmatpush.bf16.msra.mxu0 %v1280
    %1411 = vmatpush.bf16.msra.mxu0 %v1279
    %1412 = vmatmul.bf16.gmra.mxu0 %v1360
    %v1413 = vpop.f32.mrf.mxu0
    %v1414 = vadd.f32 %v1385, %v1413
    %v1415 = vpop.f32.mrf.mxu0
    %v1416 = vadd.f32 %v1387, %v1415
    %1417 = vmatmul.bf16.gmra.mxu0 %v1362
    %v1418 = vpop.f32.mrf.mxu0
    %v1419 = vadd.f32 %v1390, %v1418
    %v1420 = vpop.f32.mrf.mxu0
    %v1421 = vadd.f32 %v1392, %v1420
    %1422 = vmatmul.bf16.gmra.mxu0 %v1364
    %v1423 = vpop.f32.mrf.mxu0
    %v1424 = vadd.f32 %v1395, %v1423
    %v1425 = vpop.f32.mrf.mxu0
    %v1426 = vadd.f32 %v1397, %v1425
    %1427 = vmatmul.bf16.gmra.mxu0 %v1366
    %v1428 = vpop.f32.mrf.mxu0
    %v1429 = vadd.f32 %v1400, %v1428
    %v1430 = vpop.f32.mrf.mxu0
    %v1431 = vadd.f32 %v1402, %v1430
    %1432 = vdwg.mxu0
    %v1433 = vmax.f32 %v1414, 0.0
    %v1434 = vmax.f32 %v1416, 0.0
    %v1435 = vmax.f32 %v1419, 0.0
    %v1436 = vmax.f32 %v1421, 0.0
    %v1437 = vmax.f32 %v1424, 0.0
    %v1438 = vmax.f32 %v1426, 0.0
    %v1439 = vmax.f32 %v1429, 0.0
    %v1440 = vmax.f32 %v1431, 0.0
    %v1441 = vld [vmem:[%s9] sm:$0x7]
    %v1442 = vld [vmem:[%s10] sm:$0x7]
    %1444 = vset.pattern.permute.xlu0 0
    %1445 = vperm.xlu0 %1444, %v1442
    %v1446 = vpop.permute.xlu0 %1445
    %v1449 = vsel %vm483, %v1441, 0
    %1451 = vmatpush.msra.mxu0 0.0
    %1452 = vmatpush.msra.mxu0 0.0
    %1453 = vmatpush.msra.mxu0 0.0
    %1454 = vmatpush.msra.mxu0 0.0
    %1455 = vmatpush.msra.mxu0 0.0
    %1456 = vmatpush.msra.mxu0 0.0
    %1457 = vmatpush.msra.mxu0 0.0
    %1458 = vmatpush.msra.mxu0 0.0
    %1459 = vmatpush.msra.mxu0 %v1440
    %1460 = vmatpush.msra.mxu0 %v1439
    %1461 = vmatpush.msra.mxu0 %v1438
    %1462 = vmatpush.msra.mxu0 %v1437
    %1463 = vmatpush.msra.mxu0 %v1436
    %1464 = vmatpush.msra.mxu0 %v1435
    %1465 = vmatpush.msra.mxu0 %v1434
    %1466 = vmatpush.msra.mxu0 %v1433
    %1467 = vmatmul.f32.gmra.mxu0 %v1449
    %v1468 = vpop.f32.mrf.mxu0
    %v1469 = vadd.f32 %v1446, %v1468
    %1470 = vdwg.mxu0
    %1471 = vst [vmem:[#allocation2] sm:$0x7] %v1469
    // Predicated region
    $region46: #{tpu_custom_call.1} parent=1 // pred_check
      _
    $region47: #{tpu_custom_call.1} parent=1 // pred_check_branch
      %1473 = sbr.rel (0) target = $region49
    $region48: #{tpu_custom_call.1} parent=1 // pred_region
      %1475 = vsyncadd [#allocation3], 0
      %s1477 = sshll.u32 [#allocation2], 4
      %s1478 = int_to_ptr.vmem [resolvable:$true] %s1477
      %s1479 = sshll.u32 %s11, 4
      %s1480 = int_to_ptr.hbm [resolvable:$true] %s1479
      %1482 = dma.vmem_to_hbm [thread:$0]  %s1478, 64, %s1480, [#allocation3]
    $region49: #{tpu_custom_call.1} parent=1 // pred_fallthru
      _
    // Predicated region
    $region50: #{tpu_custom_call.1} parent=1 // pred_check
      _
    $region51: #{tpu_custom_call.1} parent=1 // pred_check_branch
      %1484 = sbr.rel (0) target = $region53
    $region52: #{tpu_custom_call.1} parent=1 // pred_region
      %1486 = dma.done [#allocation3], 64
    $region53: #{tpu_custom_call.1} parent=1 // pred_fallthru
      _
    %1487 = vsyncpa [#allocation3], 1

</llo_original>
